<compile_context>
chip_gen: v7x
topology: tpu7x:2x2x1
jax: 0.10.0
libtpu: 0.0.40
codegen_flags: <defaults>
</compile_context>

<pallas_src>
import jax
import jax.numpy as jnp
from jax.experimental import pallas as pl
from jax.experimental.pallas import tpu as pltpu


def inverse_predictor_kernel(x_ref, w1_ref, b1_ref, w2n_ref, b2n_ref, o_ref):
    # hidden = relu(x @ W1 + b1)   (bf16 MXU matmul, f32 accumulate)
    h = jnp.dot(x_ref[...], w1_ref[...], preferred_element_type=jnp.float32)
    h = jnp.maximum(h + b1_ref[...], 0.0)          # bias broadcast [1,H], f32
    # out = hidden @ (-W2) + (-b2)   (negation pre-folded into the params)
    y = jnp.dot(h.astype(w2n_ref.dtype), w2n_ref[...],
                preferred_element_type=jnp.float32)
    o_ref[...] = (y + b2n_ref[...]).astype(o_ref.dtype)


def prepare_params(w1, b1, w2, b2):
    """One-time offline param prep: fold the InversePredictor negation into
    the second-layer constants and cast matmul operands to bf16."""
    return (w1.astype(jnp.bfloat16),
            b1.astype(jnp.float32),
            (-w2).astype(jnp.bfloat16),
            (-b2).astype(jnp.float32))


def inverse_predictor(x, w1, b1, w2_neg, b2_neg, *,
                      tile_b=None, out_dtype=jnp.bfloat16):
    B, D_in = x.shape
    H = w1.shape[1]
    D_out = w2_neg.shape[1]

    if tile_b is None:
        # Mem-bound kernel: fewest, largest grid steps.  512-row tiles sit at
        # ~85% of HBM roofline (vs ~29% at 128) and are only ~a few MiB of
        # VMEM double-buffered, far under every generation's limit.
        # On v7x (2 TensorCores) prefer an even grid >= 2: pass tile_b=B//2.
        tile_b = min(B, 512)
    tile_b = min(tile_b, B)

    grid = (pl.cdiv(B, tile_b),)

    # Advisory cost estimate: 2 matmuls worth of flops, streamed bytes for
    # x + out plus one pass over the (small) parameters.
    flops = 2 * B * (D_in * H + H * D_out)
    bytes_accessed = (
        B * D_in * x.dtype.itemsize
        + B * D_out * jnp.dtype(out_dtype).itemsize
        + w1.size * w1.dtype.itemsize + b1.size * b1.dtype.itemsize
        + w2_neg.size * w2_neg.dtype.itemsize
        + b2_neg.size * b2_neg.dtype.itemsize)
    cost = pl.CostEstimate(flops=flops, transcendentals=0,
                           bytes_accessed=bytes_accessed)

    return pl.pallas_call(
        inverse_predictor_kernel,
        out_shape=jax.ShapeDtypeStruct((B, D_out), out_dtype),
        grid=grid,
        in_specs=[
            # batch-tiled activations (pipelined across grid steps)
            pl.BlockSpec((tile_b, D_in), lambda i: (i, 0)),
            # weights / biases: constant index_map -> VMEM-resident across the
            # grid; single-buffered (no point double-buffering constants).
            pl.BlockSpec((D_in, H), lambda i: (0, 0),
                         pipeline_mode=pl.Buffered(buffer_count=1)),
            pl.BlockSpec((1, H), lambda i: (0, 0),
                         pipeline_mode=pl.Buffered(buffer_count=1)),
            pl.BlockSpec((H, D_out), lambda i: (0, 0),
                         pipeline_mode=pl.Buffered(buffer_count=1)),
            pl.BlockSpec((1, D_out), lambda i: (0, 0),
                         pipeline_mode=pl.Buffered(buffer_count=1)),
        ],
        out_specs=pl.BlockSpec((tile_b, D_out), lambda i: (i, 0)),
        compiler_params=pltpu.CompilerParams(
            # batch axis is independent -> can shard across v7x's 2 TCs when
            # the grid has >= 2 steps.
            dimension_semantics=("parallel",),
        ),
        cost_estimate=cost,
    )(x, w1, b1, w2_neg, b2_neg)


def reference(x_bf16, w1, b1, w2, b2):
    # PyTorch semantics: out = -(relu(x @ W1 + b1) @ W2 + b2),
    # mirroring the kernel's bf16-matmul / f32-accumulate path.
    h = jnp.dot(x_bf16, w1.astype(jnp.bfloat16),
                preferred_element_type=jnp.float32) + b1
    h = jnp.maximum(h, 0.0)
    y = jnp.dot(h.astype(jnp.bfloat16), w2.astype(jnp.bfloat16),
                preferred_element_type=jnp.float32) + b2
    return -y


if __name__ == "__main__":
    key = jax.random.PRNGKey(0)
    kx, k1, kb1, k2, kb2 = jax.random.split(key, 5)

    # (8,128)-aligned shapes: B multiple of 8, D_in/H/D_out multiples of 128
    # so every MXU pass is full-rate and stores are lane-dense.
    B, D_in, H, D_out = 256, 128, 256, 128

    # Deployment dtype for activations: bf16.
    x = jax.random.normal(kx, (B, D_in), dtype=jnp.float32).astype(jnp.bfloat16)

    # Deterministic synthetic parameters (no checkpoint loading), f32 masters.
    w1 = jax.random.normal(k1, (D_in, H), dtype=jnp.float32) * 0.1
    b1 = jax.random.normal(kb1, (1, H), dtype=jnp.float32) * 0.01
    w2 = jax.random.normal(k2, (H, D_out), dtype=jnp.float32) * 0.1
    b2 = jax.random.normal(kb2, (1, D_out), dtype=jnp.float32) * 0.01

    # One-time offline transform (negation fold + bf16 cast of MXU operands).
    w1_p, b1_p, w2n_p, b2n_p = prepare_params(w1, b1, w2, b2)

    # Default tile_b=None -> single grid step at B=256 (min(B, 512)).
    out = inverse_predictor(x, w1_p, b1_p, w2n_p, b2n_p)
    out = jax.block_until_ready(out)

    ref = reference(x, w1, b1, w2, b2)
    assert out.shape == (B, D_out)
    assert out.dtype == jnp.bfloat16
    # bf16 output store -> compare in f32 with bf16-level tolerance.
    assert jnp.allclose(out.astype(jnp.float32), ref, atol=2e-2, rtol=2e-2), (
        out, ref)

    print("KERNEL_OK")
</pallas_src>

<mosaic_0001>
module attributes {stable_mosaic.version = 11 : i64} {
  func.func @inverse_predictor_kernel(%arg0: i32, %arg1: memref<256x128xbf16, #tpu.memory_space<vmem>>, %arg2: memref<128x256xbf16, #tpu.memory_space<vmem>>, %arg3: memref<1x256xf32, #tpu.memory_space<vmem>>, %arg4: memref<256x128xbf16, #tpu.memory_space<vmem>>, %arg5: memref<1x128xf32, #tpu.memory_space<vmem>>, %arg6: memref<256x128xbf16, #tpu.memory_space<vmem>>) attributes {dimension_semantics = [#tpu.dimension_semantics<parallel>], iteration_bounds = array<i64: 1>, scalar_prefetch = 0 : i64, scratch_operands = 0 : i64, tpu.core_type = #tpu.core_type<tc>, window_params = [{transform_indices = @transform_0, window_bounds = array<i64: 256, 128>}, {pipeline_mode = #tpu.pipeline_mode<synchronous>, transform_indices = @transform_1, window_bounds = array<i64: 128, 256>}, {pipeline_mode = #tpu.pipeline_mode<synchronous>, transform_indices = @transform_2, window_bounds = array<i64: 1, 256>}, {pipeline_mode = #tpu.pipeline_mode<synchronous>, transform_indices = @transform_3, window_bounds = array<i64: 256, 128>}, {pipeline_mode = #tpu.pipeline_mode<synchronous>, transform_indices = @transform_4, window_bounds = array<i64: 1, 128>}, {transform_indices = @transform_5, window_bounds = array<i64: 256, 128>}]} {
    %c0 = arith.constant 0 : index
    %c0_0 = arith.constant 0 : index
    %0 = vector.load %arg1[%c0, %c0_0] : memref<256x128xbf16, #tpu.memory_space<vmem>>, vector<256x128xbf16>
    %c0_1 = arith.constant 0 : index
    %c0_2 = arith.constant 0 : index
    %1 = vector.load %arg2[%c0_1, %c0_2] : memref<128x256xbf16, #tpu.memory_space<vmem>>, vector<128x256xbf16>
    %cst = arith.constant dense<0.000000e+00> : vector<256x256xf32>
    %2 = tpu.matmul %0, %1, %cst {dimension_numbers = #tpu.dot_dimension_numbers<[1], [0], [0], [1], [0, 0, 1, 1], [], []>} : vector<256x128xbf16>, vector<128x256xbf16>, vector<256x256xf32> -> vector<256x256xf32>
    %c0_3 = arith.constant 0 : index
    %c0_4 = arith.constant 0 : index
    %3 = vector.load %arg3[%c0_3, %c0_4] : memref<1x256xf32, #tpu.memory_space<vmem>>, vector<1x256xf32>
    %4 = vector.broadcast %3 : vector<1x256xf32> to vector<256x256xf32>
    %5 = arith.addf %2, %4 : vector<256x256xf32>
    %cst_5 = arith.constant 0.000000e+00 : f32
    %6 = vector.broadcast %cst_5 : f32 to vector<256x256xf32>
    %7 = arith.maximumf %5, %6 : vector<256x256xf32>
    %8 = arith.truncf %7 : vector<256x256xf32> to vector<256x256xbf16>
    %c0_6 = arith.constant 0 : index
    %c0_7 = arith.constant 0 : index
    %9 = vector.load %arg4[%c0_6, %c0_7] : memref<256x128xbf16, #tpu.memory_space<vmem>>, vector<256x128xbf16>
    %cst_8 = arith.constant dense<0.000000e+00> : vector<256x128xf32>
    %10 = tpu.matmul %8, %9, %cst_8 {dimension_numbers = #tpu.dot_dimension_numbers<[1], [0], [0], [1], [0, 0, 1, 1], [], []>} : vector<256x256xbf16>, vector<256x128xbf16>, vector<256x128xf32> -> vector<256x128xf32>
    %c0_9 = arith.constant 0 : index
    %c0_10 = arith.constant 0 : index
    %11 = vector.load %arg5[%c0_9, %c0_10] : memref<1x128xf32, #tpu.memory_space<vmem>>, vector<1x128xf32>
    %12 = vector.broadcast %11 : vector<1x128xf32> to vector<256x128xf32>
    %13 = arith.addf %10, %12 : vector<256x128xf32>
    %14 = arith.truncf %13 : vector<256x128xf32> to vector<256x128xbf16>
    %c0_11 = arith.constant 0 : index
    %c0_12 = arith.constant 0 : index
    %15 = vector.load %arg6[%c0_11, %c0_12] : memref<256x128xbf16, #tpu.memory_space<vmem>>, vector<256x128xbf16>
    tpu.vector_store %arg6[%c0_11, %c0_12], %14 {strides = array<i32>} : memref<256x128xbf16, #tpu.memory_space<vmem>>, vector<256x128xbf16>,
    return
  }
  func.func @transform_0(%arg0: i32) -> (i32, i32) {
    %c0_i32 = arith.constant 0 : i32
    %c0_i32_0 = arith.constant 0 : i32
    return %arg0, %c0_i32 : i32, i32
  }
  func.func @transform_1(%arg0: i32) -> (i32, i32) {
    %c0_i32 = arith.constant 0 : i32
    %c0_i32_0 = arith.constant 0 : i32
    %c0_i32_1 = arith.constant 0 : i32
    return %c0_i32, %c0_i32_0 : i32, i32
  }
  func.func @transform_2(%arg0: i32) -> (i32, i32) {
    %c0_i32 = arith.constant 0 : i32
    %c0_i32_0 = arith.constant 0 : i32
    %c0_i32_1 = arith.constant 0 : i32
    return %c0_i32, %c0_i32_0 : i32, i32
  }
  func.func @transform_3(%arg0: i32) -> (i32, i32) {
    %c0_i32 = arith.constant 0 : i32
    %c0_i32_0 = arith.constant 0 : i32
    %c0_i32_1 = arith.constant 0 : i32
    return %c0_i32, %c0_i32_0 : i32, i32
  }
  func.func @transform_4(%arg0: i32) -> (i32, i32) {
    %c0_i32 = arith.constant 0 : i32
    %c0_i32_0 = arith.constant 0 : i32
    %c0_i32_1 = arith.constant 0 : i32
    return %c0_i32, %c0_i32_0 : i32, i32
  }
  func.func @transform_5(%arg0: i32) -> (i32, i32) {
    %c0_i32 = arith.constant 0 : i32
    %c0_i32_0 = arith.constant 0 : i32
    return %arg0, %c0_i32 : i32, i32
  }
}

</mosaic_0001>

<llo_original>
// kernel: tpu_custom_call.1
$region0: #{tpu_custom_call.1}
  #allocation0 [shape = 'u32[]', space=smem, size = 0x4, offset = 0x4, fixed_abs, tag = 'smem constant byte address 0x4 - core index']
  #allocation1 [shape = 'u32[144,128]{1,0:T(1,128)}', space=vmem, size = 0x12000, scoped, tag = 'internal scratch']
  %s0 = inlined_call_operand.hbm [shape: bf16[256,128], index: 0, kind: input, shape index: {}]
  %s1 = inlined_call_operand.hbm [shape: bf16[128,256], index: 1, kind: input, shape index: {}]
  %s2 = inlined_call_operand.vmem [shape: f32[1,256], index: 2, kind: input, shape index: {}]
  %s3 = inlined_call_operand.hbm [shape: bf16[256,128], index: 3, kind: input, shape index: {}]
  %s4 = inlined_call_operand.vmem [shape: f32[1,128], index: 4, kind: input, shape index: {}]
  %s5 = inlined_call_operand.hbm [shape: bf16[256,128], index: 5, kind: output, shape index: {}]
  %s6 = sld [smem:[#allocation0]]
  $region42: #{tpu_custom_call.1} parent=0
    _
  %s8 = ssub.s32 1, %s6
  %s9 = scalar_select 0, %s8, %s6
  $region1: #{tpu_custom_call.1} parent=0
    #allocation2 [shape = 'u8[65536]{0}', space=vmem, size = 0x10000, scoped, tag = 'input window, operand 0, single buffered']
    #allocation3 [shape = 's32[1]{0}', space=sflag, size = 0x4, scoped, tag = 'scoped memory for tpu_custom_call.1']
    #allocation4 [shape = 's32[1]{0}', space=sflag, size = 0x4, scoped, tag = 'scoped memory for tpu_custom_call.1']
    #allocation5 [shape = 'u8[65536]{0}', space=vmem, size = 0x10000, scoped, tag = 'input window, operand 1, single buffered']
    #allocation6 [shape = 's32[1]{0}', space=sflag, size = 0x4, scoped, tag = 'scoped memory for tpu_custom_call.1']
    #allocation7 [shape = 'u8[65536]{0}', space=vmem, size = 0x10000, scoped, tag = 'input window, operand 3, single buffered']
    #allocation8 [shape = 'u8[65536]{0}', space=vmem, size = 0x10000, scoped, tag = 'output window, operand 0, single buffered']
    %10 = vsyncpa [#allocation3], 0
    %11 = vsyncpa [#allocation6], 0
    %12 = vsyncpa [#allocation4], 0
    // Predicated region
    $region2: #{tpu_custom_call.1} parent=1 // pred_check
      _
    $region3: #{tpu_custom_call.1} parent=1 // pred_check_branch
      %14 = sbr.rel (0) target = $region5
    $region4: #{tpu_custom_call.1} parent=1 // pred_region
      %s16 = ssub.s32 2048, 2048
      %17 = vsyncadd [#allocation3], %s16
      %s18 = sshll.u32 [#allocation2], 4
      %s19 = int_to_ptr.vmem [resolvable:$true] %s18
      %24 = dma.hbm_to_vmem [thread:$0]  %s0, 2048, %s19, [#allocation3], 64, 64, 4
    $region5: #{tpu_custom_call.1} parent=1 // pred_fallthru
      _
    // Predicated region
    $region6: #{tpu_custom_call.1} parent=1 // pred_check
      _
    $region7: #{tpu_custom_call.1} parent=1 // pred_check_branch
      %26 = sbr.rel (0) target = $region9
    $region8: #{tpu_custom_call.1} parent=1 // pred_region
      %s28 = ssub.s32 2048, 2048
      %29 = vsyncadd [#allocation6], %s28
      %s30 = sshll.u32 [#allocation5], 4
      %s31 = int_to_ptr.vmem [resolvable:$true] %s30
      %36 = dma.hbm_to_vmem [thread:$0]  %s1, 2048, %s31, [#allocation6], 128, 128, 8
    $region9: #{tpu_custom_call.1} parent=1 // pred_fallthru
      _
    // Predicated region
    $region10: #{tpu_custom_call.1} parent=1 // pred_check
      _
    $region11: #{tpu_custom_call.1} parent=1 // pred_check_branch
      %38 = sbr.rel (0) target = $region13
    $region12: #{tpu_custom_call.1} parent=1 // pred_region
      _
    $region13: #{tpu_custom_call.1} parent=1 // pred_fallthru
      _
    // Predicated region
    $region14: #{tpu_custom_call.1} parent=1 // pred_check
      _
    $region15: #{tpu_custom_call.1} parent=1 // pred_check_branch
      %40 = sbr.rel (0) target = $region17
    $region16: #{tpu_custom_call.1} parent=1 // pred_region
      %s42 = ssub.s32 2048, 2048
      %43 = vsyncadd [#allocation6], %s42
      %s44 = sshll.u32 [#allocation7], 4
      %s45 = int_to_ptr.vmem [resolvable:$true] %s44
      %50 = dma.hbm_to_vmem [thread:$0]  %s3, 2048, %s45, [#allocation6], 64, 64, 4
    $region17: #{tpu_custom_call.1} parent=1 // pred_fallthru
      _
    // Predicated region
    $region18: #{tpu_custom_call.1} parent=1 // pred_check
      _
    $region19: #{tpu_custom_call.1} parent=1 // pred_check_branch
      %52 = sbr.rel (0) target = $region21
    $region20: #{tpu_custom_call.1} parent=1 // pred_region
      _
    $region21: #{tpu_custom_call.1} parent=1 // pred_fallthru
      _
    // Predicated region
    $region22: #{tpu_custom_call.1} parent=1 // pred_check
      _
    $region23: #{tpu_custom_call.1} parent=1 // pred_check_branch
      %54 = sbr.rel (0) target = $region25
    $region24: #{tpu_custom_call.1} parent=1 // pred_region
      %55 = dma.done [#allocation3], 2048
    $region25: #{tpu_custom_call.1} parent=1 // pred_fallthru
      _
    // Predicated region
    $region26: #{tpu_custom_call.1} parent=1 // pred_check
      _
    $region27: #{tpu_custom_call.1} parent=1 // pred_check_branch
      %57 = sbr.rel (0) target = $region29
    $region28: #{tpu_custom_call.1} parent=1 // pred_region
      %58 = dma.done [#allocation6], 2048
    $region29: #{tpu_custom_call.1} parent=1 // pred_fallthru
      _
    // Predicated region
    $region30: #{tpu_custom_call.1} parent=1 // pred_check
      _
    $region31: #{tpu_custom_call.1} parent=1 // pred_check_branch
      %60 = sbr.rel (0) target = $region33
    $region32: #{tpu_custom_call.1} parent=1 // pred_region
      %61 = dma.done [#allocation6], 2048
    $region33: #{tpu_custom_call.1} parent=1 // pred_fallthru
      _
    %v63 = vld [vmem:[#allocation2] sm:$0xf]
    %v64 = vld [vmem:[#allocation2 + $0x4] sm:$0xf]
    %v65 = vld [vmem:[#allocation2 + $0x8] sm:$0xf]
    %v66 = vld [vmem:[#allocation2 + $0xc] sm:$0xf]
    %v67 = vld [vmem:[#allocation2 + $0x10] sm:$0xf]
    %v68 = vld [vmem:[#allocation2 + $0x14] sm:$0xf]
    %v69 = vld [vmem:[#allocation2 + $0x18] sm:$0xf]
    %v70 = vld [vmem:[#allocation2 + $0x1c] sm:$0xf]
    %v71 = vld [vmem:[#allocation2 + $0x20] sm:$0xf]
    %v72 = vld [vmem:[#allocation2 + $0x24] sm:$0xf]
    %v73 = vld [vmem:[#allocation2 + $0x28] sm:$0xf]
    %v74 = vld [vmem:[#allocation2 + $0x2c] sm:$0xf]
    %v75 = vld [vmem:[#allocation2 + $0x30] sm:$0xf]
    %v76 = vld [vmem:[#allocation2 + $0x34] sm:$0xf]
    %v77 = vld [vmem:[#allocation2 + $0x38] sm:$0xf]
    %v78 = vld [vmem:[#allocation2 + $0x3c] sm:$0xf]
    %v79 = vld [vmem:[#allocation2 + $0x40] sm:$0xf]
    %v80 = vld [vmem:[#allocation2 + $0x44] sm:$0xf]
    %v81 = vld [vmem:[#allocation2 + $0x48] sm:$0xf]
    %v82 = vld [vmem:[#allocation2 + $0x4c] sm:$0xf]
    %v83 = vld [vmem:[#allocation2 + $0x50] sm:$0xf]
    %v84 = vld [vmem:[#allocation2 + $0x54] sm:$0xf]
    %v85 = vld [vmem:[#allocation2 + $0x58] sm:$0xf]
    %v86 = vld [vmem:[#allocation2 + $0x5c] sm:$0xf]
    %v87 = vld [vmem:[#allocation2 + $0x60] sm:$0xf]
    %v88 = vld [vmem:[#allocation2 + $0x64] sm:$0xf]
    %v89 = vld [vmem:[#allocation2 + $0x68] sm:$0xf]
    %v90 = vld [vmem:[#allocation2 + $0x6c] sm:$0xf]
    %v91 = vld [vmem:[#allocation2 + $0x70] sm:$0xf]
    %v92 = vld [vmem:[#allocation2 + $0x74] sm:$0xf]
    %v93 = vld [vmem:[#allocation2 + $0x78] sm:$0xf]
    %v94 = vld [vmem:[#allocation2 + $0x7c] sm:$0xf]
    %v95 = vld [vmem:[#allocation5] sm:$0xff]
    %v96 = vld [vmem:[#allocation5 + $0x8] sm:$0xff]
    %v97 = vld [vmem:[#allocation5 + $0x10] sm:$0xff]
    %v98 = vld [vmem:[#allocation5 + $0x18] sm:$0xff]
    %v99 = vld [vmem:[#allocation5 + $0x20] sm:$0xff]
    %v100 = vld [vmem:[#allocation5 + $0x28] sm:$0xff]
    %v101 = vld [vmem:[#allocation5 + $0x30] sm:$0xff]
    %v102 = vld [vmem:[#allocation5 + $0x38] sm:$0xff]
    %v103 = vld [vmem:[#allocation5 + $0x40] sm:$0xff]
    %v104 = vld [vmem:[#allocation5 + $0x48] sm:$0xff]
    %v105 = vld [vmem:[#allocation5 + $0x50] sm:$0xff]
    %v106 = vld [vmem:[#allocation5 + $0x58] sm:$0xff]
    %v107 = vld [vmem:[#allocation5 + $0x60] sm:$0xff]
    %v108 = vld [vmem:[#allocation5 + $0x68] sm:$0xff]
    %v109 = vld [vmem:[#allocation5 + $0x70] sm:$0xff]
    %v110 = vld [vmem:[#allocation5 + $0x78] sm:$0xff]
    %v111 = vld [vmem:[%s2] sm:$0x3]
    %v113 = vlaneseq
    %v114 = vshrl.u32 %v113, 7
    %v115 = vsub.s32 0, %v114
    %v116 = vrot.slane %v111, %v115
    %v117 = vlaneseq
    %v118 = vshrl.u32 %v117, 7
    %v119 = vsub.s32 1, %v118
    %v120 = vrot.slane %v111, %v119
    %v155 = vunpack.c.l.b16 %v63
    %v156 = vunpack.c.l.b16 %v64
    %v157 = vunpack.c.l.b16 %v65
    %v158 = vunpack.c.l.b16 %v66
    %v159 = vunpack.c.l.b16 %v67
    %v160 = vunpack.c.l.b16 %v68
    %v161 = vunpack.c.l.b16 %v69
    %v162 = vunpack.c.l.b16 %v70
    %v163 = vunpack.c.l.b16 %v71
    %v164 = vunpack.c.l.b16 %v72
    %v165 = vunpack.c.l.b16 %v73
    %v166 = vunpack.c.l.b16 %v74
    %v167 = vunpack.c.l.b16 %v75
    %v168 = vunpack.c.l.b16 %v76
    %v169 = vunpack.c.l.b16 %v77
    %v170 = vunpack.c.l.b16 %v78
    %v171 = vunpack.c.l.b16 %v79
    %v172 = vunpack.c.l.b16 %v80
    %v173 = vunpack.c.l.b16 %v81
    %v174 = vunpack.c.l.b16 %v82
    %v175 = vunpack.c.l.b16 %v83
    %v176 = vunpack.c.l.b16 %v84
    %v177 = vunpack.c.l.b16 %v85
    %v178 = vunpack.c.l.b16 %v86
    %v179 = vunpack.c.l.b16 %v87
    %v180 = vunpack.c.l.b16 %v88
    %v181 = vunpack.c.l.b16 %v89
    %v182 = vunpack.c.l.b16 %v90
    %v183 = vunpack.c.l.b16 %v91
    %v184 = vunpack.c.l.b16 %v92
    %v185 = vunpack.c.l.b16 %v93
    %v186 = vunpack.c.l.b16 %v94
    %v187 = vpack.c.b16 %v156, %v155
    %v188 = vpack.c.b16 %v158, %v157
    %v189 = vpack.c.b16 %v160, %v159
    %v190 = vpack.c.b16 %v162, %v161
    %v191 = vpack.c.b16 %v164, %v163
    %v192 = vpack.c.b16 %v166, %v165
    %v193 = vpack.c.b16 %v168, %v167
    %v194 = vpack.c.b16 %v170, %v169
    %v195 = vpack.c.b16 %v172, %v171
    %v196 = vpack.c.b16 %v174, %v173
    %v197 = vpack.c.b16 %v176, %v175
    %v198 = vpack.c.b16 %v178, %v177
    %v199 = vpack.c.b16 %v180, %v179
    %v200 = vpack.c.b16 %v182, %v181
    %v201 = vpack.c.b16 %v184, %v183
    %v202 = vpack.c.b16 %v186, %v185
    %v235 = vunpack.c.l.b16 %v95
    %v236 = vunpack.c.h.b16 %v95
    %v237 = vunpack.c.l.b16 %v96
    %v238 = vunpack.c.h.b16 %v96
    %v239 = vunpack.c.l.b16 %v97
    %v240 = vunpack.c.h.b16 %v97
    %v241 = vunpack.c.l.b16 %v98
    %v242 = vunpack.c.h.b16 %v98
    %v243 = vunpack.c.l.b16 %v99
    %v244 = vunpack.c.h.b16 %v99
    %v245 = vunpack.c.l.b16 %v100
    %v246 = vunpack.c.h.b16 %v100
    %v247 = vunpack.c.l.b16 %v101
    %v248 = vunpack.c.h.b16 %v101
    %v249 = vunpack.c.l.b16 %v102
    %v250 = vunpack.c.h.b16 %v102
    %v251 = vunpack.c.l.b16 %v103
    %v252 = vunpack.c.h.b16 %v103
    %v253 = vunpack.c.l.b16 %v104
    %v254 = vunpack.c.h.b16 %v104
    %v255 = vunpack.c.l.b16 %v105
    %v256 = vunpack.c.h.b16 %v105
    %v257 = vunpack.c.l.b16 %v106
    %v258 = vunpack.c.h.b16 %v106
    %v259 = vunpack.c.l.b16 %v107
    %v260 = vunpack.c.h.b16 %v107
    %v261 = vunpack.c.l.b16 %v108
    %v262 = vunpack.c.h.b16 %v108
    %v263 = vunpack.c.l.b16 %v109
    %v264 = vunpack.c.h.b16 %v109
    %v265 = vunpack.c.l.b16 %v110
    %v266 = vunpack.c.h.b16 %v110
    %v267 = vpack.c.b16 %v237, %v235
    %v268 = vpack.c.b16 %v238, %v236
    %v269 = vpack.c.b16 %v241, %v239
    %v270 = vpack.c.b16 %v242, %v240
    %v271 = vpack.c.b16 %v245, %v243
    %v272 = vpack.c.b16 %v246, %v244
    %v273 = vpack.c.b16 %v249, %v247
    %v274 = vpack.c.b16 %v250, %v248
    %v275 = vpack.c.b16 %v253, %v251
    %v276 = vpack.c.b16 %v254, %v252
    %v277 = vpack.c.b16 %v257, %v255
    %v278 = vpack.c.b16 %v258, %v256
    %v279 = vpack.c.b16 %v261, %v259
    %v280 = vpack.c.b16 %v262, %v260
    %v281 = vpack.c.b16 %v265, %v263
    %v282 = vpack.c.b16 %v266, %v264
    %299 = vmatprep.subr.bf16.mxu0 %v268
    %300 = vmatpush1.bf16.msra.mxu0 %v267
    %301 = vmatprep.subr.bf16.mxu0 %v270
    %302 = vmatpush1.bf16.msra.mxu0 %v269
    %303 = vmatprep.subr.bf16.mxu0 %v272
    %304 = vmatpush1.bf16.msra.mxu0 %v271
    %305 = vmatprep.subr.bf16.mxu0 %v274
    %306 = vmatpush1.bf16.msra.mxu0 %v273
    %307 = vmatprep.subr.bf16.mxu0 %v276
    %308 = vmatpush1.bf16.msra.mxu0 %v275
    %309 = vmatprep.subr.bf16.mxu0 %v278
    %310 = vmatpush1.bf16.msra.mxu0 %v277
    %311 = vmatprep.subr.bf16.mxu0 %v280
    %312 = vmatpush1.bf16.msra.mxu0 %v279
    %313 = vmatprep.subr.bf16.mxu0 %v282
    %314 = vmatpush1.bf16.msra.mxu0 %v281
    %315 = vmatprep.subr.bf16.mxu0 0
    %316 = vmatpush1.bf16.msra.mxu0 0
    %317 = vmatprep.subr.bf16.mxu0 0
    %318 = vmatpush1.bf16.msra.mxu0 0
    %319 = vmatprep.subr.bf16.mxu0 0
    %320 = vmatpush1.bf16.msra.mxu0 0
    %321 = vmatprep.subr.bf16.mxu0 0
    %322 = vmatpush1.bf16.msra.mxu0 0
    %323 = vmatprep.subr.bf16.mxu0 0
    %324 = vmatpush1.bf16.msra.mxu0 0
    %325 = vmatprep.subr.bf16.mxu0 0
    %326 = vmatpush1.bf16.msra.mxu0 0
    %327 = vmatprep.subr.bf16.mxu0 0
    %328 = vmatpush1.bf16.msra.mxu0 0
    %329 = vmatprep.subr.bf16.mxu0 0
    %330 = vmatpush1.bf16.msra.mxu0 0
    %331 = vmatprep.mubr.bf16.mxu0 0
    %332 = vmatmul.mubr.bf16.gmra.mrb[0].mxu0 %v187
    %v333 = vpop.f32.mrb[0].mxu0
    %v334 = vadd.f32 %v116, %v333
    %v335 = vpop.f32.mrb[0].mxu0
    %v336 = vadd.f32 %v120, %v335
    %v337 = vpop.f32.mrb[0].mxu0
    %v338 = vadd.f32 %v116, %v337
    %v339 = vpop.f32.mrb[0].mxu0
    %v340 = vadd.f32 %v120, %v339
    %341 = vmatprep.mubr.bf16.mxu0 0
    %342 = vmatmul.mubr.bf16.gmra.mrb[0].mxu0 %v188
    %v343 = vpop.f32.mrb[0].mxu0
    %v344 = vadd.f32 %v116, %v343
    %v345 = vpop.f32.mrb[0].mxu0
    %v346 = vadd.f32 %v120, %v345
    %v347 = vpop.f32.mrb[0].mxu0
    %v348 = vadd.f32 %v116, %v347
    %v349 = vpop.f32.mrb[0].mxu0
    %v350 = vadd.f32 %v120, %v349
    %351 = vmatprep.mubr.bf16.mxu0 0
    %352 = vmatmul.mubr.bf16.gmra.mrb[0].mxu0 %v189
    %v353 = vpop.f32.mrb[0].mxu0
    %v354 = vadd.f32 %v116, %v353
    %v355 = vpop.f32.mrb[0].mxu0
    %v356 = vadd.f32 %v120, %v355
    %v357 = vpop.f32.mrb[0].mxu0
    %v358 = vadd.f32 %v116, %v357
    %v359 = vpop.f32.mrb[0].mxu0
    %v360 = vadd.f32 %v120, %v359
    %361 = vmatprep.mubr.bf16.mxu0 0
    %362 = vmatmul.mubr.bf16.gmra.mrb[0].mxu0 %v190
    %v363 = vpop.f32.mrb[0].mxu0
    %v364 = vadd.f32 %v116, %v363
    %v365 = vpop.f32.mrb[0].mxu0
    %v366 = vadd.f32 %v120, %v365
    %v367 = vpop.f32.mrb[0].mxu0
    %v368 = vadd.f32 %v116, %v367
    %v369 = vpop.f32.mrb[0].mxu0
    %v370 = vadd.f32 %v120, %v369
    %371 = vmatprep.mubr.bf16.mxu0 0
    %372 = vmatmul.mubr.bf16.gmra.mrb[0].mxu0 %v191
    %v373 = vpop.f32.mrb[0].mxu0
    %v374 = vadd.f32 %v116, %v373
    %v375 = vpop.f32.mrb[0].mxu0
    %v376 = vadd.f32 %v120, %v375
    %v377 = vpop.f32.mrb[0].mxu0
    %v378 = vadd.f32 %v116, %v377
    %v379 = vpop.f32.mrb[0].mxu0
    %v380 = vadd.f32 %v120, %v379
    %381 = vmatprep.mubr.bf16.mxu0 0
    %382 = vmatmul.mubr.bf16.gmra.mrb[0].mxu0 %v192
    %v383 = vpop.f32.mrb[0].mxu0
    %v384 = vadd.f32 %v116, %v383
    %v385 = vpop.f32.mrb[0].mxu0
    %v386 = vadd.f32 %v120, %v385
    %v387 = vpop.f32.mrb[0].mxu0
    %v388 = vadd.f32 %v116, %v387
    %v389 = vpop.f32.mrb[0].mxu0
    %v390 = vadd.f32 %v120, %v389
    %391 = vmatprep.mubr.bf16.mxu0 0
    %392 = vmatmul.mubr.bf16.gmra.mrb[0].mxu0 %v193
    %v393 = vpop.f32.mrb[0].mxu0
    %v394 = vadd.f32 %v116, %v393
    %v395 = vpop.f32.mrb[0].mxu0
    %v396 = vadd.f32 %v120, %v395
    %v397 = vpop.f32.mrb[0].mxu0
    %v398 = vadd.f32 %v116, %v397
    %v399 = vpop.f32.mrb[0].mxu0
    %v400 = vadd.f32 %v120, %v399
    %401 = vmatprep.mubr.bf16.mxu0 0
    %402 = vmatmul.mubr.bf16.gmra.mrb[0].mxu0 %v194
    %v403 = vpop.f32.mrb[0].mxu0
    %v404 = vadd.f32 %v116, %v403
    %v405 = vpop.f32.mrb[0].mxu0
    %v406 = vadd.f32 %v120, %v405
    %v407 = vpop.f32.mrb[0].mxu0
    %v408 = vadd.f32 %v116, %v407
    %v409 = vpop.f32.mrb[0].mxu0
    %v410 = vadd.f32 %v120, %v409
    %411 = vmatprep.mubr.bf16.mxu0 0
    %412 = vmatmul.mubr.bf16.gmra.mrb[0].mxu0 %v195
    %v413 = vpop.f32.mrb[0].mxu0
    %v414 = vadd.f32 %v116, %v413
    %v415 = vpop.f32.mrb[0].mxu0
    %v416 = vadd.f32 %v120, %v415
    %v417 = vpop.f32.mrb[0].mxu0
    %v418 = vadd.f32 %v116, %v417
    %v419 = vpop.f32.mrb[0].mxu0
    %v420 = vadd.f32 %v120, %v419
    %421 = vmatprep.mubr.bf16.mxu0 0
    %422 = vmatmul.mubr.bf16.gmra.mrb[0].mxu0 %v196
    %v423 = vpop.f32.mrb[0].mxu0
    %v424 = vadd.f32 %v116, %v423
    %v425 = vpop.f32.mrb[0].mxu0
    %v426 = vadd.f32 %v120, %v425
    %v427 = vpop.f32.mrb[0].mxu0
    %v428 = vadd.f32 %v116, %v427
    %v429 = vpop.f32.mrb[0].mxu0
    %v430 = vadd.f32 %v120, %v429
    %431 = vmatprep.mubr.bf16.mxu0 0
    %432 = vmatmul.mubr.bf16.gmra.mrb[0].mxu0 %v197
    %v433 = vpop.f32.mrb[0].mxu0
    %v434 = vadd.f32 %v116, %v433
    %v435 = vpop.f32.mrb[0].mxu0
    %v436 = vadd.f32 %v120, %v435
    %v437 = vpop.f32.mrb[0].mxu0
    %v438 = vadd.f32 %v116, %v437
    %v439 = vpop.f32.mrb[0].mxu0
    %v440 = vadd.f32 %v120, %v439
    %441 = vmatprep.mubr.bf16.mxu0 0
    %442 = vmatmul.mubr.bf16.gmra.mrb[0].mxu0 %v198
    %v443 = vpop.f32.mrb[0].mxu0
    %v444 = vadd.f32 %v116, %v443
    %v445 = vpop.f32.mrb[0].mxu0
    %v446 = vadd.f32 %v120, %v445
    %v447 = vpop.f32.mrb[0].mxu0
    %v448 = vadd.f32 %v116, %v447
    %v449 = vpop.f32.mrb[0].mxu0
    %v450 = vadd.f32 %v120, %v449
    %451 = vmatprep.mubr.bf16.mxu0 0
    %452 = vmatmul.mubr.bf16.gmra.mrb[0].mxu0 %v199
    %v453 = vpop.f32.mrb[0].mxu0
    %v454 = vadd.f32 %v116, %v453
    %v455 = vpop.f32.mrb[0].mxu0
    %v456 = vadd.f32 %v120, %v455
    %v457 = vpop.f32.mrb[0].mxu0
    %v458 = vadd.f32 %v116, %v457
    %v459 = vpop.f32.mrb[0].mxu0
    %v460 = vadd.f32 %v120, %v459
    %461 = vmatprep.mubr.bf16.mxu0 0
    %462 = vmatmul.mubr.bf16.gmra.mrb[0].mxu0 %v200
    %v463 = vpop.f32.mrb[0].mxu0
    %v464 = vadd.f32 %v116, %v463
    %v465 = vpop.f32.mrb[0].mxu0
    %v466 = vadd.f32 %v120, %v465
    %v467 = vpop.f32.mrb[0].mxu0
    %v468 = vadd.f32 %v116, %v467
    %v469 = vpop.f32.mrb[0].mxu0
    %v470 = vadd.f32 %v120, %v469
    %471 = vmatprep.mubr.bf16.mxu0 0
    %472 = vmatmul.mubr.bf16.gmra.mrb[0].mxu0 %v201
    %v473 = vpop.f32.mrb[0].mxu0
    %v474 = vadd.f32 %v116, %v473
    %v475 = vpop.f32.mrb[0].mxu0
    %v476 = vadd.f32 %v120, %v475
    %v477 = vpop.f32.mrb[0].mxu0
    %v478 = vadd.f32 %v116, %v477
    %v479 = vpop.f32.mrb[0].mxu0
    %v480 = vadd.f32 %v120, %v479
    %481 = vmatprep.mubr.bf16.mxu0 0
    %482 = vmatmul.mubr.bf16.gmra.mrb[0].mxu0 %v202
    %v483 = vpop.f32.mrb[0].mxu0
    %v484 = vadd.f32 %v116, %v483
    %v485 = vpop.f32.mrb[0].mxu0
    %v486 = vadd.f32 %v120, %v485
    %v487 = vpop.f32.mrb[0].mxu0
    %v488 = vadd.f32 %v116, %v487
    %v489 = vpop.f32.mrb[0].mxu0
    %v490 = vadd.f32 %v120, %v489
    %491 = vdwg.mxu0
    %v492 = vmax.f32 %v334, 0.0
    %v493 = vmax.f32 %v336, 0.0
    %v494 = vmax.f32 %v338, 0.0
    %v495 = vmax.f32 %v340, 0.0
    %v496 = vmax.f32 %v344, 0.0
    %v497 = vmax.f32 %v346, 0.0
    %v498 = vmax.f32 %v348, 0.0
    %v499 = vmax.f32 %v350, 0.0
    %v500 = vmax.f32 %v354, 0.0
    %v501 = vmax.f32 %v356, 0.0
    %v502 = vmax.f32 %v358, 0.0
    %v503 = vmax.f32 %v360, 0.0
    %v504 = vmax.f32 %v364, 0.0
    %v505 = vmax.f32 %v366, 0.0
    %v506 = vmax.f32 %v368, 0.0
    %v507 = vmax.f32 %v370, 0.0
    %v508 = vmax.f32 %v374, 0.0
    %v509 = vmax.f32 %v376, 0.0
    %v510 = vmax.f32 %v378, 0.0
    %v511 = vmax.f32 %v380, 0.0
    %v512 = vmax.f32 %v384, 0.0
    %v513 = vmax.f32 %v386, 0.0
    %v514 = vmax.f32 %v388, 0.0
    %v515 = vmax.f32 %v390, 0.0
    %v516 = vmax.f32 %v394, 0.0
    %v517 = vmax.f32 %v396, 0.0
    %v518 = vmax.f32 %v398, 0.0
    %v519 = vmax.f32 %v400, 0.0
    %v520 = vmax.f32 %v404, 0.0
    %v521 = vmax.f32 %v406, 0.0
    %v522 = vmax.f32 %v408, 0.0
    %v523 = vmax.f32 %v410, 0.0
    %v524 = vmax.f32 %v414, 0.0
    %v525 = vmax.f32 %v416, 0.0
    %v526 = vmax.f32 %v418, 0.0
    %v527 = vmax.f32 %v420, 0.0
    %v528 = vmax.f32 %v424, 0.0
    %v529 = vmax.f32 %v426, 0.0
    %v530 = vmax.f32 %v428, 0.0
    %v531 = vmax.f32 %v430, 0.0
    %v532 = vmax.f32 %v434, 0.0
    %v533 = vmax.f32 %v436, 0.0
    %v534 = vmax.f32 %v438, 0.0
    %v535 = vmax.f32 %v440, 0.0
    %v536 = vmax.f32 %v444, 0.0
    %v537 = vmax.f32 %v446, 0.0
    %v538 = vmax.f32 %v448, 0.0
    %v539 = vmax.f32 %v450, 0.0
    %v540 = vmax.f32 %v454, 0.0
    %v541 = vmax.f32 %v456, 0.0
    %v542 = vmax.f32 %v458, 0.0
    %v543 = vmax.f32 %v460, 0.0
    %v544 = vmax.f32 %v464, 0.0
    %v545 = vmax.f32 %v466, 0.0
    %v546 = vmax.f32 %v468, 0.0
    %v547 = vmax.f32 %v470, 0.0
    %v548 = vmax.f32 %v474, 0.0
    %v549 = vmax.f32 %v476, 0.0
    %v550 = vmax.f32 %v478, 0.0
    %v551 = vmax.f32 %v480, 0.0
    %v552 = vmax.f32 %v484, 0.0
    %v553 = vmax.f32 %v486, 0.0
    %v554 = vmax.f32 %v488, 0.0
    %v555 = vmax.f32 %v490, 0.0
    %v556 = vpack.c.bf16 %v494, %v492
    %v557 = vpack.c.bf16 %v495, %v493
    %v558 = vpack.c.bf16 %v498, %v496
    %v559 = vpack.c.bf16 %v499, %v497
    %v560 = vpack.c.bf16 %v502, %v500
    %v561 = vpack.c.bf16 %v503, %v501
    %v562 = vpack.c.bf16 %v506, %v504
    %v563 = vpack.c.bf16 %v507, %v505
    %v564 = vpack.c.bf16 %v510, %v508
    %v565 = vpack.c.bf16 %v511, %v509
    %v566 = vpack.c.bf16 %v514, %v512
    %v567 = vpack.c.bf16 %v515, %v513
    %v568 = vpack.c.bf16 %v518, %v516
    %v569 = vpack.c.bf16 %v519, %v517
    %v570 = vpack.c.bf16 %v522, %v520
    %v571 = vpack.c.bf16 %v523, %v521
    %v572 = vpack.c.bf16 %v526, %v524
    %v573 = vpack.c.bf16 %v527, %v525
    %v574 = vpack.c.bf16 %v530, %v528
    %v575 = vpack.c.bf16 %v531, %v529
    %v576 = vpack.c.bf16 %v534, %v532
    %v577 = vpack.c.bf16 %v535, %v533
    %v578 = vpack.c.bf16 %v538, %v536
    %v579 = vpack.c.bf16 %v539, %v537
    %v580 = vpack.c.bf16 %v542, %v540
    %v581 = vpack.c.bf16 %v543, %v541
    %v582 = vpack.c.bf16 %v546, %v544
    %v583 = vpack.c.bf16 %v547, %v545
    %v584 = vpack.c.bf16 %v550, %v548
    %v585 = vpack.c.bf16 %v551, %v549
    %v586 = vpack.c.bf16 %v554, %v552
    %v587 = vpack.c.bf16 %v555, %v553
    %v588 = vld [vmem:[#allocation7] sm:$0xf]
    %v589 = vld [vmem:[#allocation7 + $0x4] sm:$0xf]
    %v590 = vld [vmem:[#allocation7 + $0x8] sm:$0xf]
    %v591 = vld [vmem:[#allocation7 + $0xc] sm:$0xf]
    %v592 = vld [vmem:[#allocation7 + $0x10] sm:$0xf]
    %v593 = vld [vmem:[#allocation7 + $0x14] sm:$0xf]
    %v594 = vld [vmem:[#allocation7 + $0x18] sm:$0xf]
    %v595 = vld [vmem:[#allocation7 + $0x1c] sm:$0xf]
    %v596 = vld [vmem:[#allocation7 + $0x20] sm:$0xf]
    %v597 = vld [vmem:[#allocation7 + $0x24] sm:$0xf]
    %v598 = vld [vmem:[#allocation7 + $0x28] sm:$0xf]
    %v599 = vld [vmem:[#allocation7 + $0x2c] sm:$0xf]
    %v600 = vld [vmem:[#allocation7 + $0x30] sm:$0xf]
    %v601 = vld [vmem:[#allocation7 + $0x34] sm:$0xf]
    %v602 = vld [vmem:[#allocation7 + $0x38] sm:$0xf]
    %v603 = vld [vmem:[#allocation7 + $0x3c] sm:$0xf]
    %v604 = vld [vmem:[#allocation7 + $0x40] sm:$0xf]
    %v605 = vld [vmem:[#allocation7 + $0x44] sm:$0xf]
    %v606 = vld [vmem:[#allocation7 + $0x48] sm:$0xf]
    %v607 = vld [vmem:[#allocation7 + $0x4c] sm:$0xf]
    %v608 = vld [vmem:[#allocation7 + $0x50] sm:$0xf]
    %v609 = vld [vmem:[#allocation7 + $0x54] sm:$0xf]
    %v610 = vld [vmem:[#allocation7 + $0x58] sm:$0xf]
    %v611 = vld [vmem:[#allocation7 + $0x5c] sm:$0xf]
    %v612 = vld [vmem:[#allocation7 + $0x60] sm:$0xf]
    %v613 = vld [vmem:[#allocation7 + $0x64] sm:$0xf]
    %v614 = vld [vmem:[#allocation7 + $0x68] sm:$0xf]
    %v615 = vld [vmem:[#allocation7 + $0x6c] sm:$0xf]
    %v616 = vld [vmem:[#allocation7 + $0x70] sm:$0xf]
    %v617 = vld [vmem:[#allocation7 + $0x74] sm:$0xf]
    %v618 = vld [vmem:[#allocation7 + $0x78] sm:$0xf]
    %v619 = vld [vmem:[#allocation7 + $0x7c] sm:$0xf]
    %v620 = vld [vmem:[%s4] sm:$0x1]
    %v622 = vlaneseq
    %v623 = vshrl.u32 %v622, 7
    %v624 = vsub.s32 0, %v623
    %v625 = vrot.slane %v620, %v624
    %v659 = vunpack.c.l.b16 %v588
    %v660 = vunpack.c.l.b16 %v589
    %v661 = vunpack.c.l.b16 %v590
    %v662 = vunpack.c.l.b16 %v591
    %v663 = vunpack.c.l.b16 %v592
    %v664 = vunpack.c.l.b16 %v593
    %v665 = vunpack.c.l.b16 %v594
    %v666 = vunpack.c.l.b16 %v595
    %v667 = vunpack.c.l.b16 %v596
    %v668 = vunpack.c.l.b16 %v597
    %v669 = vunpack.c.l.b16 %v598
    %v670 = vunpack.c.l.b16 %v599
    %v671 = vunpack.c.l.b16 %v600
    %v672 = vunpack.c.l.b16 %v601
    %v673 = vunpack.c.l.b16 %v602
    %v674 = vunpack.c.l.b16 %v603
    %v675 = vunpack.c.l.b16 %v604
    %v676 = vunpack.c.l.b16 %v605
    %v677 = vunpack.c.l.b16 %v606
    %v678 = vunpack.c.l.b16 %v607
    %v679 = vunpack.c.l.b16 %v608
    %v680 = vunpack.c.l.b16 %v609
    %v681 = vunpack.c.l.b16 %v610
    %v682 = vunpack.c.l.b16 %v611
    %v683 = vunpack.c.l.b16 %v612
    %v684 = vunpack.c.l.b16 %v613
    %v685 = vunpack.c.l.b16 %v614
    %v686 = vunpack.c.l.b16 %v615
    %v687 = vunpack.c.l.b16 %v616
    %v688 = vunpack.c.l.b16 %v617
    %v689 = vunpack.c.l.b16 %v618
    %v690 = vunpack.c.l.b16 %v619
    %v691 = vpack.c.b16 %v660, %v659
    %v692 = vpack.c.b16 %v662, %v661
    %v693 = vpack.c.b16 %v664, %v663
    %v694 = vpack.c.b16 %v666, %v665
    %v695 = vpack.c.b16 %v668, %v667
    %v696 = vpack.c.b16 %v670, %v669
    %v697 = vpack.c.b16 %v672, %v671
    %v698 = vpack.c.b16 %v674, %v673
    %v699 = vpack.c.b16 %v676, %v675
    %v700 = vpack.c.b16 %v678, %v677
    %v701 = vpack.c.b16 %v680, %v679
    %v702 = vpack.c.b16 %v682, %v681
    %v703 = vpack.c.b16 %v684, %v683
    %v704 = vpack.c.b16 %v686, %v685
    %v705 = vpack.c.b16 %v688, %v687
    %v706 = vpack.c.b16 %v690, %v689
    %723 = vmatprep.subr.bf16.mxu0 0
    %724 = vmatpush1.bf16.msra.mxu0 %v691
    %725 = vmatprep.subr.bf16.mxu0 0
    %726 = vmatpush1.bf16.msra.mxu0 %v692
    %727 = vmatprep.subr.bf16.mxu0 0
    %728 = vmatpush1.bf16.msra.mxu0 %v693
    %729 = vmatprep.subr.bf16.mxu0 0
    %730 = vmatpush1.bf16.msra.mxu0 %v694
    %731 = vmatprep.subr.bf16.mxu0 0
    %732 = vmatpush1.bf16.msra.mxu0 %v695
    %733 = vmatprep.subr.bf16.mxu0 0
    %734 = vmatpush1.bf16.msra.mxu0 %v696
    %735 = vmatprep.subr.bf16.mxu0 0
    %736 = vmatpush1.bf16.msra.mxu0 %v697
    %737 = vmatprep.subr.bf16.mxu0 0
    %738 = vmatpush1.bf16.msra.mxu0 %v698
    %739 = vmatprep.subr.bf16.mxu0 0
    %740 = vmatpush1.bf16.msra.mxu0 %v699
    %741 = vmatprep.subr.bf16.mxu0 0
    %742 = vmatpush1.bf16.msra.mxu0 %v700
    %743 = vmatprep.subr.bf16.mxu0 0
    %744 = vmatpush1.bf16.msra.mxu0 %v701
    %745 = vmatprep.subr.bf16.mxu0 0
    %746 = vmatpush1.bf16.msra.mxu0 %v702
    %747 = vmatprep.subr.bf16.mxu0 0
    %748 = vmatpush1.bf16.msra.mxu0 %v703
    %749 = vmatprep.subr.bf16.mxu0 0
    %750 = vmatpush1.bf16.msra.mxu0 %v704
    %751 = vmatprep.subr.bf16.mxu0 0
    %752 = vmatpush1.bf16.msra.mxu0 %v705
    %753 = vmatprep.subr.bf16.mxu0 0
    %754 = vmatpush1.bf16.msra.mxu0 %v706
    %755 = vmatprep.mubr.bf16.mxu0 %v557
    %756 = vmatmul.mubr.bf16.gmra.mrb[0].mxu0 %v556
    %v757 = vpop.f32.mrb[0].mxu0
    %v758 = vadd.f32 %v625, %v757
    %v759 = vpop.f32.mrb[0].mxu0
    %v760 = vpop.f32.mrb[0].mxu0
    %v761 = vadd.f32 %v625, %v760
    %v762 = vpop.f32.mrb[0].mxu0
    %763 = vmatprep.mubr.bf16.mxu0 %v559
    %764 = vmatmul.mubr.bf16.gmra.mrb[0].mxu0 %v558
    %v765 = vpop.f32.mrb[0].mxu0
    %v766 = vadd.f32 %v625, %v765
    %v767 = vpop.f32.mrb[0].mxu0
    %v768 = vpop.f32.mrb[0].mxu0
    %v769 = vadd.f32 %v625, %v768
    %v770 = vpop.f32.mrb[0].mxu0
    %771 = vmatprep.mubr.bf16.mxu0 %v561
    %772 = vmatmul.mubr.bf16.gmra.mrb[0].mxu0 %v560
    %v773 = vpop.f32.mrb[0].mxu0
    %v774 = vadd.f32 %v625, %v773
    %v775 = vpop.f32.mrb[0].mxu0
    %v776 = vpop.f32.mrb[0].mxu0
    %v777 = vadd.f32 %v625, %v776
    %v778 = vpop.f32.mrb[0].mxu0
    %779 = vmatprep.mubr.bf16.mxu0 %v563
    %780 = vmatmul.mubr.bf16.gmra.mrb[0].mxu0 %v562
    %v781 = vpop.f32.mrb[0].mxu0
    %v782 = vadd.f32 %v625, %v781
    %v783 = vpop.f32.mrb[0].mxu0
    %v784 = vpop.f32.mrb[0].mxu0
    %v785 = vadd.f32 %v625, %v784
    %v786 = vpop.f32.mrb[0].mxu0
    %787 = vmatprep.mubr.bf16.mxu0 %v565
    %788 = vmatmul.mubr.bf16.gmra.mrb[0].mxu0 %v564
    %v789 = vpop.f32.mrb[0].mxu0
    %v790 = vadd.f32 %v625, %v789
    %v791 = vpop.f32.mrb[0].mxu0
    %v792 = vpop.f32.mrb[0].mxu0
    %v793 = vadd.f32 %v625, %v792
    %v794 = vpop.f32.mrb[0].mxu0
    %795 = vmatprep.mubr.bf16.mxu0 %v567
    %796 = vmatmul.mubr.bf16.gmra.mrb[0].mxu0 %v566
    %v797 = vpop.f32.mrb[0].mxu0
    %v798 = vadd.f32 %v625, %v797
    %v799 = vpop.f32.mrb[0].mxu0
    %v800 = vpop.f32.mrb[0].mxu0
    %v801 = vadd.f32 %v625, %v800
    %v802 = vpop.f32.mrb[0].mxu0
    %803 = vmatprep.mubr.bf16.mxu0 %v569
    %804 = vmatmul.mubr.bf16.gmra.mrb[0].mxu0 %v568
    %v805 = vpop.f32.mrb[0].mxu0
    %v806 = vadd.f32 %v625, %v805
    %v807 = vpop.f32.mrb[0].mxu0
    %v808 = vpop.f32.mrb[0].mxu0
    %v809 = vadd.f32 %v625, %v808
    %v810 = vpop.f32.mrb[0].mxu0
    %811 = vmatprep.mubr.bf16.mxu0 %v571
    %812 = vmatmul.mubr.bf16.gmra.mrb[0].mxu0 %v570
    %v813 = vpop.f32.mrb[0].mxu0
    %v814 = vadd.f32 %v625, %v813
    %v815 = vpop.f32.mrb[0].mxu0
    %v816 = vpop.f32.mrb[0].mxu0
    %v817 = vadd.f32 %v625, %v816
    %v818 = vpop.f32.mrb[0].mxu0
    %819 = vmatprep.mubr.bf16.mxu0 %v573
    %820 = vmatmul.mubr.bf16.gmra.mrb[0].mxu0 %v572
    %v821 = vpop.f32.mrb[0].mxu0
    %v822 = vadd.f32 %v625, %v821
    %v823 = vpop.f32.mrb[0].mxu0
    %v824 = vpop.f32.mrb[0].mxu0
    %v825 = vadd.f32 %v625, %v824
    %v826 = vpop.f32.mrb[0].mxu0
    %827 = vmatprep.mubr.bf16.mxu0 %v575
    %828 = vmatmul.mubr.bf16.gmra.mrb[0].mxu0 %v574
    %v829 = vpop.f32.mrb[0].mxu0
    %v830 = vadd.f32 %v625, %v829
    %v831 = vpop.f32.mrb[0].mxu0
    %v832 = vpop.f32.mrb[0].mxu0
    %v833 = vadd.f32 %v625, %v832
    %v834 = vpop.f32.mrb[0].mxu0
    %835 = vmatprep.mubr.bf16.mxu0 %v577
    %836 = vmatmul.mubr.bf16.gmra.mrb[0].mxu0 %v576
    %v837 = vpop.f32.mrb[0].mxu0
    %v838 = vadd.f32 %v625, %v837
    %v839 = vpop.f32.mrb[0].mxu0
    %v840 = vpop.f32.mrb[0].mxu0
    %v841 = vadd.f32 %v625, %v840
    %v842 = vpop.f32.mrb[0].mxu0
    %843 = vmatprep.mubr.bf16.mxu0 %v579
    %844 = vmatmul.mubr.bf16.gmra.mrb[0].mxu0 %v578
    %v845 = vpop.f32.mrb[0].mxu0
    %v846 = vadd.f32 %v625, %v845
    %v847 = vpop.f32.mrb[0].mxu0
    %v848 = vpop.f32.mrb[0].mxu0
    %v849 = vadd.f32 %v625, %v848
    %v850 = vpop.f32.mrb[0].mxu0
    %851 = vmatprep.mubr.bf16.mxu0 %v581
    %852 = vmatmul.mubr.bf16.gmra.mrb[0].mxu0 %v580
    %v853 = vpop.f32.mrb[0].mxu0
    %v854 = vadd.f32 %v625, %v853
    %v855 = vpop.f32.mrb[0].mxu0
    %v856 = vpop.f32.mrb[0].mxu0
    %v857 = vadd.f32 %v625, %v856
    %v858 = vpop.f32.mrb[0].mxu0
    %859 = vmatprep.mubr.bf16.mxu0 %v583
    %860 = vmatmul.mubr.bf16.gmra.mrb[0].mxu0 %v582
    %v861 = vpop.f32.mrb[0].mxu0
    %v862 = vadd.f32 %v625, %v861
    %v863 = vpop.f32.mrb[0].mxu0
    %v864 = vpop.f32.mrb[0].mxu0
    %v865 = vadd.f32 %v625, %v864
    %v866 = vpop.f32.mrb[0].mxu0
    %867 = vmatprep.mubr.bf16.mxu0 %v585
    %868 = vmatmul.mubr.bf16.gmra.mrb[0].mxu0 %v584
    %v869 = vpop.f32.mrb[0].mxu0
    %v870 = vadd.f32 %v625, %v869
    %v871 = vpop.f32.mrb[0].mxu0
    %v872 = vpop.f32.mrb[0].mxu0
    %v873 = vadd.f32 %v625, %v872
    %v874 = vpop.f32.mrb[0].mxu0
    %875 = vmatprep.mubr.bf16.mxu0 %v587
    %876 = vmatmul.mubr.bf16.gmra.mrb[0].mxu0 %v586
    %v877 = vpop.f32.mrb[0].mxu0
    %v878 = vadd.f32 %v625, %v877
    %v879 = vpop.f32.mrb[0].mxu0
    %v880 = vpop.f32.mrb[0].mxu0
    %v881 = vadd.f32 %v625, %v880
    %v882 = vpop.f32.mrb[0].mxu0
    %883 = vdwg.mxu0
    %v884 = vpack.c.bf16 %v761, %v758
    %v885 = vpack.c.bf16 %v769, %v766
    %v886 = vpack.c.bf16 %v777, %v774
    %v887 = vpack.c.bf16 %v785, %v782
    %v888 = vpack.c.bf16 %v793, %v790
    %v889 = vpack.c.bf16 %v801, %v798
    %v890 = vpack.c.bf16 %v809, %v806
    %v891 = vpack.c.bf16 %v817, %v814
    %v892 = vpack.c.bf16 %v825, %v822
    %v893 = vpack.c.bf16 %v833, %v830
    %v894 = vpack.c.bf16 %v841, %v838
    %v895 = vpack.c.bf16 %v849, %v846
    %v896 = vpack.c.bf16 %v857, %v854
    %v897 = vpack.c.bf16 %v865, %v862
    %v898 = vpack.c.bf16 %v873, %v870
    %v899 = vpack.c.bf16 %v881, %v878
    %v916 = vunpack.c.l.b16 %v884
    %v917 = vunpack.c.h.b16 %v884
    %v918 = vunpack.c.l.b16 %v885
    %v919 = vunpack.c.h.b16 %v885
    %v920 = vunpack.c.l.b16 %v886
    %v921 = vunpack.c.h.b16 %v886
    %v922 = vunpack.c.l.b16 %v887
    %v923 = vunpack.c.h.b16 %v887
    %v924 = vunpack.c.l.b16 %v888
    %v925 = vunpack.c.h.b16 %v888
    %v926 = vunpack.c.l.b16 %v889
    %v927 = vunpack.c.h.b16 %v889
    %v928 = vunpack.c.l.b16 %v890
    %v929 = vunpack.c.h.b16 %v890
    %v930 = vunpack.c.l.b16 %v891
    %v931 = vunpack.c.h.b16 %v891
    %v932 = vunpack.c.l.b16 %v892
    %v933 = vunpack.c.h.b16 %v892
    %v934 = vunpack.c.l.b16 %v893
    %v935 = vunpack.c.h.b16 %v893
    %v936 = vunpack.c.l.b16 %v894
    %v937 = vunpack.c.h.b16 %v894
    %v938 = vunpack.c.l.b16 %v895
    %v939 = vunpack.c.h.b16 %v895
    %v940 = vunpack.c.l.b16 %v896
    %v941 = vunpack.c.h.b16 %v896
    %v942 = vunpack.c.l.b16 %v897
    %v943 = vunpack.c.h.b16 %v897
    %v944 = vunpack.c.l.b16 %v898
    %v945 = vunpack.c.h.b16 %v898
    %v946 = vunpack.c.l.b16 %v899
    %v947 = vunpack.c.h.b16 %v899
    %v948 = vpack.c.b16 %v916, %v916
    %v949 = vpack.c.b16 %v917, %v917
    %v950 = vpack.c.b16 %v918, %v918
    %v951 = vpack.c.b16 %v919, %v919
    %v952 = vpack.c.b16 %v920, %v920
    %v953 = vpack.c.b16 %v921, %v921
    %v954 = vpack.c.b16 %v922, %v922
    %v955 = vpack.c.b16 %v923, %v923
    %v956 = vpack.c.b16 %v924, %v924
    %v957 = vpack.c.b16 %v925, %v925
    %v958 = vpack.c.b16 %v926, %v926
    %v959 = vpack.c.b16 %v927, %v927
    %v960 = vpack.c.b16 %v928, %v928
    %v961 = vpack.c.b16 %v929, %v929
    %v962 = vpack.c.b16 %v930, %v930
    %v963 = vpack.c.b16 %v931, %v931
    %v964 = vpack.c.b16 %v932, %v932
    %v965 = vpack.c.b16 %v933, %v933
    %v966 = vpack.c.b16 %v934, %v934
    %v967 = vpack.c.b16 %v935, %v935
    %v968 = vpack.c.b16 %v936, %v936
    %v969 = vpack.c.b16 %v937, %v937
    %v970 = vpack.c.b16 %v938, %v938
    %v971 = vpack.c.b16 %v939, %v939
    %v972 = vpack.c.b16 %v940, %v940
    %v973 = vpack.c.b16 %v941, %v941
    %v974 = vpack.c.b16 %v942, %v942
    %v975 = vpack.c.b16 %v943, %v943
    %v976 = vpack.c.b16 %v944, %v944
    %v977 = vpack.c.b16 %v945, %v945
    %v978 = vpack.c.b16 %v946, %v946
    %v979 = vpack.c.b16 %v947, %v947
    %1012 = vst [vmem:[#allocation8] sm:$0xf] %v948
    %1013 = vst [vmem:[#allocation8 + $0x4] sm:$0xf] %v949
    %1014 = vst [vmem:[#allocation8 + $0x8] sm:$0xf] %v950
    %1015 = vst [vmem:[#allocation8 + $0xc] sm:$0xf] %v951
    %1016 = vst [vmem:[#allocation8 + $0x10] sm:$0xf] %v952
    %1017 = vst [vmem:[#allocation8 + $0x14] sm:$0xf] %v953
    %1018 = vst [vmem:[#allocation8 + $0x18] sm:$0xf] %v954
    %1019 = vst [vmem:[#allocation8 + $0x1c] sm:$0xf] %v955
    %1020 = vst [vmem:[#allocation8 + $0x20] sm:$0xf] %v956
    %1021 = vst [vmem:[#allocation8 + $0x24] sm:$0xf] %v957
    %1022 = vst [vmem:[#allocation8 + $0x28] sm:$0xf] %v958
    %1023 = vst [vmem:[#allocation8 + $0x2c] sm:$0xf] %v959
    %1024 = vst [vmem:[#allocation8 + $0x30] sm:$0xf] %v960
    %1025 = vst [vmem:[#allocation8 + $0x34] sm:$0xf] %v961
    %1026 = vst [vmem:[#allocation8 + $0x38] sm:$0xf] %v962
    %1027 = vst [vmem:[#allocation8 + $0x3c] sm:$0xf] %v963
    %1028 = vst [vmem:[#allocation8 + $0x40] sm:$0xf] %v964
    %1029 = vst [vmem:[#allocation8 + $0x44] sm:$0xf] %v965
    %1030 = vst [vmem:[#allocation8 + $0x48] sm:$0xf] %v966
    %1031 = vst [vmem:[#allocation8 + $0x4c] sm:$0xf] %v967
    %1032 = vst [vmem:[#allocation8 + $0x50] sm:$0xf] %v968
    %1033 = vst [vmem:[#allocation8 + $0x54] sm:$0xf] %v969
    %1034 = vst [vmem:[#allocation8 + $0x58] sm:$0xf] %v970
    %1035 = vst [vmem:[#allocation8 + $0x5c] sm:$0xf] %v971
    %1036 = vst [vmem:[#allocation8 + $0x60] sm:$0xf] %v972
    %1037 = vst [vmem:[#allocation8 + $0x64] sm:$0xf] %v973
    %1038 = vst [vmem:[#allocation8 + $0x68] sm:$0xf] %v974
    %1039 = vst [vmem:[#allocation8 + $0x6c] sm:$0xf] %v975
    %1040 = vst [vmem:[#allocation8 + $0x70] sm:$0xf] %v976
    %1041 = vst [vmem:[#allocation8 + $0x74] sm:$0xf] %v977
    %1042 = vst [vmem:[#allocation8 + $0x78] sm:$0xf] %v978
    %1043 = vst [vmem:[#allocation8 + $0x7c] sm:$0xf] %v979
    // Predicated region
    $region34: #{tpu_custom_call.1} parent=1 // pred_check
      _
    $region35: #{tpu_custom_call.1} parent=1 // pred_check_branch
      %1045 = sbr.rel (0) target = $region37
    $region36: #{tpu_custom_call.1} parent=1 // pred_region
      %s1047 = ssub.s32 2048, 2048
      %1048 = vsyncadd [#allocation4], %s1047
      %s1049 = sshll.u32 [#allocation8], 4
      %s1050 = int_to_ptr.vmem [resolvable:$true] %s1049
      %1055 = dma.vmem_to_hbm [thread:$0]  %s1050, 2048, %s5, [#allocation4], 64, 64, 4
    $region37: #{tpu_custom_call.1} parent=1 // pred_fallthru
      _
    // Predicated region
    $region38: #{tpu_custom_call.1} parent=1 // pred_check
      _
    $region39: #{tpu_custom_call.1} parent=1 // pred_check_branch
      %1057 = sbr.rel (0) target = $region41
    $region40: #{tpu_custom_call.1} parent=1 // pred_region
      %1058 = dma.done [#allocation4], 2048
    $region41: #{tpu_custom_call.1} parent=1 // pred_fallthru
      _
    %1059 = vsyncpa [#allocation3], 1
    %1060 = vsyncpa [#allocation6], 1
    %1061 = vsyncpa [#allocation4], 1

</llo_original>
